<compile_context>
chip_gen: v5e
topology: v5e:2x2
jax: 0.10.0
libtpu: 0.0.40
codegen_flags: <defaults>
</compile_context>

<pallas_src>
import functools

import jax
import jax.numpy as jnp
import numpy as np
from jax import lax
from jax.experimental import pallas as pl
from jax.experimental.pallas import tpu as pltpu

_LANE = 128
_SUBLANE = 8


def _round_up(n, m):
    return -(-int(n) // m) * m


def _loss_variance_kernel(x_ref, t_ref, mu_ref, acc_ref, *,
                          num_labels_padded, rows_padded, num_channels):
    """Grid (B, P, HW_tiles): streams HW tiles; one fused MXU contraction per
    tile accumulates per-label [sum(xc); sum(xc^2); count] into the resident
    (1, 1, R_pad, L_pad) output block."""
    h = pl.program_id(2)

    @pl.when(h == 0)
    def _init():
        acc_ref[...] = jnp.zeros_like(acc_ref)

    x = x_ref[0]            # (C, T)  f32
    t = t_ref[0]            # (1, T)  int32
    mu = mu_ref[0]          # (C, 1)  f32
    tile = x.shape[1]

    # Constant per-channel shift (variance is shift-invariant -> exact); only
    # improves f32 conditioning of the single-pass sum / sum-of-squares form.
    xc = x - mu

    # Fused LHS: [xc ; xc*xc ; ones ; zero-pad] -> (R_pad, T).  One weight
    # push and one result drain instead of three separate contractions.
    parts = [xc, xc * xc, jnp.ones((1, tile), jnp.float32)]
    pad_rows = rows_padded - (2 * num_channels + 1)
    if pad_rows > 0:
        parts.append(jnp.zeros((pad_rows, tile), jnp.float32))
    lhs = jnp.concatenate(parts, axis=0)

    # One-hot mask over labels [1, L_pad]: compare iota rows against the
    # shifted (1, T) target (fold the +1 onto the small operand).  Label 0
    # (background and lane padding) maps to -1 and never matches.
    lab = lax.broadcasted_iota(jnp.int32, (num_labels_padded, tile), 0)
    mask = (lab == (t - 1)).astype(jnp.float32)          # (L_pad, T)

    dn = (((1,), (1,)), ((), ()))                        # contract pixel axis of both
    contrib = lax.dot_general(lhs, mask, dn,
                              preferred_element_type=jnp.float32)  # (R_pad, L_pad)
    acc_ref[...] += contrib[None, None, :, :]


def loss_variance(x, target, *, max_label, lane_tile=8192, hw_splits=None):
    """x: (B, C, H, W) float32, target: (B, H, W) int with labels in [0, max_label]."""
    B, C, H, W = x.shape
    HW = H * W

    # Feed both v7x TensorCores even when the batch is tiny; a size-1 axis
    # (and a no-op) everywhere else.
    if hw_splits is None:
        hw_splits = 2 if B < 2 else 1
    P = max(1, int(hw_splits))

    # Label axis only appears on the sublane axis of in-kernel temporaries and
    # the tiny accumulator, so a multiple of 8 suffices (not 128).
    L_pad = max(_SUBLANE, _round_up(max_label, _SUBLANE))
    R_pad = _round_up(2 * C + 1, _SUBLANE)

    # Lane tile: as large as the per-step VMEM bill allows (double-buffered
    # inputs + mask/LHS temporaries + accumulators), capped at lane_tile.
    budget = 24 * 1024 * 1024   # headroom inside the 32 MiB scoped limit (v7x-safe)
    per_lane_bytes = 4 * (4 * C + 2 + L_pad + R_pad)
    const_bytes = 4 * (2 * C + 2 * R_pad * max(L_pad, _LANE))
    t_cap = max(_LANE, ((budget - const_bytes) // per_lane_bytes) // _LANE * _LANE)
    lane_tile = max(_LANE, (int(lane_tile) // _LANE) * _LANE)
    T = min(lane_tile, t_cap, _round_up(HW, _LANE))

    HW_pad = _round_up(HW, T * P)
    n_h_per = (HW_pad // T) // P

    x_flat = x.reshape(B, C, HW).astype(jnp.float32)
    t_flat = target.reshape(B, 1, HW).astype(jnp.int32)
    if HW_pad != HW:
        pad = HW_pad - HW
        x_flat = jnp.pad(x_flat, ((0, 0), (0, 0), (0, pad)))
        t_flat = jnp.pad(t_flat, ((0, 0), (0, 0), (0, pad)))  # padded pixels -> label 0 (ignored)

    # Per-(batch, channel) shift shared by all HW splits (so partial sums
    # combine exactly); any constant works, a short prefix mean is enough.
    prefix = min(HW, 1024)
    mu = jnp.mean(x_flat[:, :, :prefix], axis=2, keepdims=True)   # (B, C, 1)

    kernel = functools.partial(
        _loss_variance_kernel,
        num_labels_padded=L_pad, rows_padded=R_pad, num_channels=C)

    # TODO(synk): labels outside [1, max_label] are silently dropped (documented
    # contract); no host-side guard equivalent to torch.unique() is emitted.
    acc = pl.pallas_call(
        kernel,
        out_shape=jax.ShapeDtypeStruct((B, P, R_pad, L_pad), jnp.float32),
        grid_spec=pltpu.PrefetchScalarGridSpec(
            num_scalar_prefetch=0,
            grid=(B, P, n_h_per),
            in_specs=[
                pl.BlockSpec((1, C, T), lambda b, p, h: (b, 0, p * n_h_per + h)),
                pl.BlockSpec((1, 1, T), lambda b, p, h: (b, 0, p * n_h_per + h)),
                pl.BlockSpec((1, C, 1), lambda b, p, h: (b, 0, 0)),
            ],
            out_specs=pl.BlockSpec((1, 1, R_pad, L_pad),
                                   lambda b, p, h: (b, p, 0, 0)),
        ),
        compiler_params=pltpu.CompilerParams(
            dimension_semantics=("parallel", "parallel", "arbitrary"),
            vmem_limit_bytes=32 * 1024 * 1024,
        ),
    )(x_flat, t_flat, mu)

    # Tiny finalize in JAX: combine the HW splits, unbiased per-channel
    # variance per instance, sum over channels + instances, normalize by the
    # number of unique nonzero labels, average over the batch.
    acc = jnp.sum(acc, axis=1)                   # (B, R_pad, L_pad)
    s = acc[:, :C, :]                            # per-label per-channel sum(xc)
    sq = acc[:, C:2 * C, :]                      # per-label per-channel sum(xc^2)
    cnt = acc[:, 2 * C:2 * C + 1, :]             # per-label pixel counts (exact ints in f32)
    present = cnt >= 0.5
    multi = cnt >= 1.5
    safe_cnt = jnp.maximum(cnt, 1.0)
    safe_den = jnp.maximum(cnt - 1.0, 1.0)
    var = (sq - s * s / safe_cnt) / safe_den     # unbiased variance
    var = jnp.where(multi, var, 0.0)
    sum_var = jnp.sum(var, axis=(1, 2))                            # (B,)
    n_uniq = jnp.sum(jnp.where(present, 1.0, 0.0), axis=(1, 2))    # (B,)
    return jnp.mean(sum_var / (n_uniq + 1e-8))


def _reference_loss(x, t):
    """Pure numpy reference matching the PyTorch module exactly."""
    x = np.asarray(x, dtype=np.float64)
    t = np.asarray(t)
    B, C, H, W = x.shape
    loss = 0.0
    for k in range(B):
        vals = np.unique(t[k])
        vals = vals[vals != 0]
        sum_var = 0.0
        for v in vals:
            mask = (t[k] == v).reshape(-1)
            inst = x[k].reshape(C, -1)[:, mask]  # (C, N)
            if inst.shape[1] > 1:
                sum_var += np.var(inst, axis=1, ddof=1).sum()
        loss += sum_var / (len(vals) + 1e-8)
    return loss / B


if __name__ == "__main__":
    B, C, H, W = 2, 4, 16, 16
    MAX_LABEL = 3  # instance labels in {0 (background), 1, 2, 3}

    key = jax.random.PRNGKey(0)
    kx, kt = jax.random.split(key)
    x = jax.random.normal(kx, (B, C, H, W), dtype=jnp.float32)
    target = jax.random.randint(kt, (B, H, W), 0, MAX_LABEL + 1, dtype=jnp.int32)

    loss = loss_variance(x, target, max_label=MAX_LABEL)
    loss = jax.block_until_ready(loss)

    ref = _reference_loss(np.array(x), np.array(target))
    assert np.allclose(float(loss), ref, rtol=1e-4, atol=1e-5), (float(loss), ref)

    print("KERNEL_OK")
</pallas_src>

<mosaic_0001>
module attributes {stable_mosaic.version = 11 : i64} {
  func.func @_loss_variance_kernel(%arg0: i32, %arg1: i32, %arg2: i32, %arg3: memref<1x4x256xf32, #tpu.memory_space<vmem>>, %arg4: memref<1x1x256xi32, #tpu.memory_space<vmem>>, %arg5: memref<1x4x1xf32, #tpu.memory_space<vmem>>, %arg6: memref<1x1x16x8xf32, #tpu.memory_space<vmem>>) attributes {dimension_semantics = [#tpu.dimension_semantics<parallel>, #tpu.dimension_semantics<parallel>, #tpu.dimension_semantics<arbitrary>], iteration_bounds = array<i64: 2, 1, 1>, scalar_prefetch = 0 : i64, scratch_operands = 0 : i64, tpu.core_type = #tpu.core_type<tc>, window_params = [{transform_indices = @transform_0, window_bounds = array<i64: 1, 4, 256>}, {transform_indices = @transform_1, window_bounds = array<i64: 1, 1, 256>}, {transform_indices = @transform_2, window_bounds = array<i64: 1, 4, 1>}, {transform_indices = @transform_3, window_bounds = array<i64: 1, 1, 16, 8>}]} {
    %c0_i32 = arith.constant 0 : i32
    %0 = arith.cmpi eq, %arg2, %c0_i32 : i32
    %1 = arith.extui %0 : i1 to i32
    %c0_i32_0 = arith.constant 0 : i32
    %2 = arith.cmpi ne, %1, %c0_i32_0 : i32
    scf.if %2 {
      %cst_19 = arith.constant 0.000000e+00 : f32
      %27 = vector.broadcast %cst_19 : f32 to vector<1x1x16x8xf32>
      %c0_20 = arith.constant 0 : index
      %c0_21 = arith.constant 0 : index
      %c0_22 = arith.constant 0 : index
      %c0_23 = arith.constant 0 : index
      %28 = vector.load %arg6[%c0_20, %c0_21, %c0_22, %c0_23] : memref<1x1x16x8xf32, #tpu.memory_space<vmem>>, vector<1x1x16x8xf32>
      tpu.vector_store %arg6[%c0_20, %c0_21, %c0_22, %c0_23], %27 {strides = array<i32>} : memref<1x1x16x8xf32, #tpu.memory_space<vmem>>, vector<1x1x16x8xf32>,
    } else {
    }
    %c0 = arith.constant 0 : index
    %c0_1 = arith.constant 0 : index
    %c0_2 = arith.constant 0 : index
    %3 = vector.load %arg3[%c0, %c0_1, %c0_2] : memref<1x4x256xf32, #tpu.memory_space<vmem>>, vector<1x4x256xf32>
    %4 = vector.shape_cast %3 : vector<1x4x256xf32> to vector<4x256xf32>
    %c0_3 = arith.constant 0 : index
    %c0_4 = arith.constant 0 : index
    %c0_5 = arith.constant 0 : index
    %5 = vector.load %arg4[%c0_3, %c0_4, %c0_5] : memref<1x1x256xi32, #tpu.memory_space<vmem>>, vector<1x1x256xi32>
    %6 = vector.shape_cast %5 : vector<1x1x256xi32> to vector<1x256xi32>
    %c0_6 = arith.constant 0 : index
    %c0_7 = arith.constant 0 : index
    %c0_8 = arith.constant 0 : index
    %7 = vector.load %arg5[%c0_6, %c0_7, %c0_8] : memref<1x4x1xf32, #tpu.memory_space<vmem>>, vector<1x4x1xf32>
    %8 = vector.shape_cast %7 : vector<1x4x1xf32> to vector<4x1xf32>
    %9 = vector.broadcast %8 : vector<4x1xf32> to vector<4x256xf32>
    %10 = arith.subf %4, %9 : vector<4x256xf32>
    %11 = arith.mulf %10, %10 : vector<4x256xf32>
    %cst = arith.constant 1.000000e+00 : f32
    %12 = vector.broadcast %cst : f32 to vector<1x256xf32>
    %cst_9 = arith.constant 0.000000e+00 : f32
    %13 = vector.broadcast %cst_9 : f32 to vector<7x256xf32>
    %14 = tpu.concatenate %10, %11, %12, %13 in 0 : vector<4x256xf32>, vector<4x256xf32>, vector<1x256xf32>, vector<7x256xf32> -> vector<16x256xf32>
    %15 = tpu.iota {dimensions = array<i32: 0>} : vector<8x256xi32>
    %c1_i32 = arith.constant 1 : i32
    %16 = vector.broadcast %c1_i32 : i32 to vector<1x256xi32>
    %17 = arith.subi %6, %16 : vector<1x256xi32>
    %18 = vector.broadcast %17 : vector<1x256xi32> to vector<8x256xi32>
    %19 = arith.cmpi eq, %15, %18 : vector<8x256xi32>
    %20 = arith.extui %19 : vector<8x256xi1> to vector<8x256xi32>
    %21 = arith.sitofp %20 : vector<8x256xi32> to vector<8x256xf32>
    %cst_10 = arith.constant dense<0.000000e+00> : vector<16x8xf32>
    %22 = tpu.matmul %14, %21, %cst_10 {dimension_numbers = #tpu.dot_dimension_numbers<[1], [1], [0], [0], [0, 0, 1, 0], [], []>} : vector<16x256xf32>, vector<8x256xf32>, vector<16x8xf32> -> vector<16x8xf32>
    %c0_11 = arith.constant 0 : index
    %c0_12 = arith.constant 0 : index
    %c0_13 = arith.constant 0 : index
    %c0_14 = arith.constant 0 : index
    %23 = vector.load %arg6[%c0_11, %c0_12, %c0_13, %c0_14] : memref<1x1x16x8xf32, #tpu.memory_space<vmem>>, vector<1x1x16x8xf32>
    %24 = vector.shape_cast %22 : vector<16x8xf32> to vector<1x1x16x8xf32>
    %25 = arith.addf %23, %24 : vector<1x1x16x8xf32>
    %c0_15 = arith.constant 0 : index
    %c0_16 = arith.constant 0 : index
    %c0_17 = arith.constant 0 : index
    %c0_18 = arith.constant 0 : index
    %26 = vector.load %arg6[%c0_15, %c0_16, %c0_17, %c0_18] : memref<1x1x16x8xf32, #tpu.memory_space<vmem>>, vector<1x1x16x8xf32>
    tpu.vector_store %arg6[%c0_15, %c0_16, %c0_17, %c0_18], %25 {strides = array<i32>} : memref<1x1x16x8xf32, #tpu.memory_space<vmem>>, vector<1x1x16x8xf32>,
    return
  }
  func.func @transform_0(%arg0: i32, %arg1: i32, %arg2: i32) -> (i32, i32, i32) {
    %c1_i32 = arith.constant 1 : i32
    %0 = arith.muli %arg1, %c1_i32 : i32
    %1 = arith.addi %0, %arg2 : i32
    %c0_i32 = arith.constant 0 : i32
    %c0_i32_0 = arith.constant 0 : i32
    return %arg0, %c0_i32, %1 : i32, i32, i32
  }
  func.func @transform_1(%arg0: i32, %arg1: i32, %arg2: i32) -> (i32, i32, i32) {
    %c1_i32 = arith.constant 1 : i32
    %0 = arith.muli %arg1, %c1_i32 : i32
    %1 = arith.addi %0, %arg2 : i32
    %c0_i32 = arith.constant 0 : i32
    %c0_i32_0 = arith.constant 0 : i32
    return %arg0, %c0_i32, %1 : i32, i32, i32
  }
  func.func @transform_2(%arg0: i32, %arg1: i32, %arg2: i32) -> (i32, i32, i32) {
    %c0_i32 = arith.constant 0 : i32
    %c0_i32_0 = arith.constant 0 : i32
    %c0_i32_1 = arith.constant 0 : i32
    return %arg0, %c0_i32, %c0_i32_0 : i32, i32, i32
  }
  func.func @transform_3(%arg0: i32, %arg1: i32, %arg2: i32) -> (i32, i32, i32, i32) {
    %c0_i32 = arith.constant 0 : i32
    %c0_i32_0 = arith.constant 0 : i32
    %c0_i32_1 = arith.constant 0 : i32
    return %arg0, %arg1, %c0_i32, %c0_i32_0 : i32, i32, i32, i32
  }
}

</mosaic_0001>

<llo_original>
// kernel: tpu_custom_call.1
$region0: #{tpu_custom_call.1}
  #allocation0 [shape = 'u32[]', space=smem, size = 0x4, offset = 0x4, fixed_abs, tag = 'smem constant byte address 0x4 - core index']
  #allocation1 [shape = 'u32[72,128]{1,0:T(1,128)}', space=vmem, size = 0x9000, scoped, tag = 'internal scratch']
  %s0 = inlined_call_operand.hbm [shape: f32[2,4,256], index: 0, kind: input, shape index: {}]
  %s1 = inlined_call_operand.vmem [shape: s32[2,1,256], index: 1, kind: input, shape index: {}]
  %s2 = inlined_call_operand.vmem [shape: f32[2,4,1], index: 2, kind: input, shape index: {}]
  %s3 = inlined_call_operand.vmem [shape: f32[2,1,16,8], index: 3, kind: output, shape index: {}]
  %s4 = sld [smem:[#allocation0]]
  $region53: #{tpu_custom_call.1} parent=0
    _
  %s6 = ssub.s32 1, %s4
  %s7 = scalar_select 0, %s6, %s4
  $region1: #{tpu_custom_call.1} parent=0
    #allocation2 [shape = 'u8[8192]{0}', space=vmem, size = 0x2000, scoped, tag = 'input window, operand 0']
    #allocation3 [shape = 's32[2]{0}', space=sflag, size = 0x8, scoped, tag = 'scoped memory for tpu_custom_call.1']
    %8 = vsyncpa [#allocation3], 0
    %s9 = scalar_lea.sflag [#allocation3], 1
    %10 = vsyncpa %s9, 0
    loop: start=0, step=1, limit=4
    $region2: #{tpu_custom_call.1} parent=1 // loop_pre_header
      _
    $region3: #{tpu_custom_call.1} parent=1 // loop_header
      %s12 = sphi 0, %s16
      %p13 = scmp.ge.s32.totalorder %s12, 4
      %s19 = sphi 0, %s38
      %s20 = sphi 0, %s34
      %s21 = sphi 0, %s30
      %s22 = sphi 0, %s19
      %s23 = sphi 0, %s20
      %s24 = sphi 0, %s21
      %s25 = sphi 0, %s22
      %s26 = sphi 0, %s23
      %s27 = sphi 0, %s24
      %s45 = sphi 0, %s47
      %s48 = sphi 0, %s45
      %s49 = sphi 0, %s48
      %s65 = sphi 0, %s49
      %s75 = sphi 0, %s77
      %s78 = sphi 0, %s75
      %s79 = sphi 0, %s78
      %s95 = sphi 0, %s79
      %s101 = sphi 0, %s103
      %s104 = sphi 0, %s101
      %s105 = sphi 0, %s104
      %s121 = sphi 0, %s105
      %s129 = sphi 0, %s131
      %s132 = sphi 0, %s129
      %s133 = sphi 0, %s132
      %s149 = sphi 0, %s133
    $region4: #{tpu_custom_call.1} parent=1 // loop_header_branch
      %15 = sbr.rel (%p13) target = $region8
    $region5: #{tpu_custom_call.1} parent=1 // loop_body
      %s17 = ssub.s32 %s12, 1
      %s18 = ssub.s32 %s12, 2
      %s28 = sadd.s32 1, %s21
      %p29 = scmp.ge.s32.totalorder %s28, 1
      %s30 = scalar_select %p29, 0, %s28
      %s31 = sadd.s32 1, %s20
      %s32 = scalar_select %p29, %s31, %s20
      %p33 = scmp.ge.s32.totalorder %s32, 1
      %s34 = scalar_select %p33, 0, %s32
      %s35 = sadd.s32 1, %s19
      %s36 = scalar_select %p33, %s35, %s19
      %p37 = scmp.ge.s32.totalorder %s36, 2
      %s38 = scalar_select %p37, 0, %s36
      %s39 = sadd.s32 %s20, %s21
      %s40 = sadd.s32 %s34, %s30
      %s41 = ssub.s32 %s19, %s38
      %s42 = ssub.s32 %s39, %s40
      %s43 = sor.u32 %s41, %s42
      %p44 = scmp.eq.s32.totalorder %s43, 0
      %s46 = sadd.s32 %s45, 1
      %s47 = scalar_select %p44, %s45, %s46
      %p50 = pneg %p44
      %p51 = scmp.eq.s32.totalorder %s12, 1
      %p52 = por %p50, %p51
      %p53 = scmp.ne.s32.totalorder %s45, %s48
      %p54 = scmp.eq.s32.totalorder %s12, 0
      %p55 = por %p53, %p54
      %p56 = scmp.ne.s32.totalorder %s45, %s48
      %p57 = scmp.eq.s32.totalorder %s17, 1
      %p58 = por %p56, %p57
      %p59 = scmp.ne.s32.totalorder %s48, %s49
      %p60 = scmp.eq.s32.totalorder %s17, 0
      %p61 = por %p59, %p60
      %p62 = scmp.ne.s32.totalorder %s48, %s49
      %p63 = scmp.eq.s32.totalorder %s18, 1
      %p64 = por %p62, %p63
      %p66 = scmp.ne.s32.totalorder %s49, %s65
      %p67 = scmp.eq.s32.totalorder %s18, 0
      %p68 = por %p66, %p67
      %s69 = sadd.s32 %s20, %s21
      %s70 = sadd.s32 %s34, %s30
      %s71 = ssub.s32 %s19, %s38
      %s72 = ssub.s32 %s69, %s70
      %s73 = sor.u32 %s71, %s72
      %p74 = scmp.eq.s32.totalorder %s73, 0
      %s76 = sadd.s32 %s75, 1
      %s77 = scalar_select %p74, %s75, %s76
      %p80 = pneg %p74
      %p81 = scmp.eq.s32.totalorder %s12, 1
      %p82 = por %p80, %p81
      %p83 = scmp.ne.s32.totalorder %s75, %s78
      %p84 = scmp.eq.s32.totalorder %s12, 0
      %p85 = por %p83, %p84
      %p86 = scmp.ne.s32.totalorder %s75, %s78
      %p87 = scmp.eq.s32.totalorder %s17, 1
      %p88 = por %p86, %p87
      %p89 = scmp.ne.s32.totalorder %s78, %s79
      %p90 = scmp.eq.s32.totalorder %s17, 0
      %p91 = por %p89, %p90
      %p92 = scmp.ne.s32.totalorder %s78, %s79
      %p93 = scmp.eq.s32.totalorder %s18, 1
      %p94 = por %p92, %p93
      %p96 = scmp.ne.s32.totalorder %s79, %s95
      %p97 = scmp.eq.s32.totalorder %s18, 0
      %p98 = por %p96, %p97
      %s99 = ssub.s32 %s19, %s38
      %p100 = scmp.eq.s32.totalorder %s99, 0
      %s102 = sadd.s32 %s101, 1
      %s103 = scalar_select %p100, %s101, %s102
      %p106 = pneg %p100
      %p107 = scmp.eq.s32.totalorder %s12, 1
      %p108 = por %p106, %p107
      %p109 = scmp.ne.s32.totalorder %s101, %s104
      %p110 = scmp.eq.s32.totalorder %s12, 0
      %p111 = por %p109, %p110
      %p112 = scmp.ne.s32.totalorder %s101, %s104
      %p113 = scmp.eq.s32.totalorder %s17, 1
      %p114 = por %p112, %p113
      %p115 = scmp.ne.s32.totalorder %s104, %s105
      %p116 = scmp.eq.s32.totalorder %s17, 0
      %p117 = por %p115, %p116
      %p118 = scmp.ne.s32.totalorder %s104, %s105
      %p119 = scmp.eq.s32.totalorder %s18, 1
      %p120 = por %p118, %p119
      %p122 = scmp.ne.s32.totalorder %s105, %s121
      %p123 = scmp.eq.s32.totalorder %s18, 0
      %p124 = por %p122, %p123
      %s125 = ssub.s32 %s19, %s38
      %s126 = ssub.s32 %s20, %s34
      %s127 = sor.u32 %s125, %s126
      %p128 = scmp.eq.s32.totalorder %s127, 0
      %s130 = sadd.s32 %s129, 1
      %s131 = scalar_select %p128, %s129, %s130
      %p134 = pneg %p128
      %p135 = scmp.eq.s32.totalorder %s12, 1
      %p136 = por %p134, %p135
      %p137 = scmp.ne.s32.totalorder %s129, %s132
      %p138 = scmp.eq.s32.totalorder %s12, 0
      %p139 = por %p137, %p138
      %p140 = scmp.ne.s32.totalorder %s129, %s132
      %p141 = scmp.eq.s32.totalorder %s17, 1
      %p142 = por %p140, %p141
      %p143 = scmp.ne.s32.totalorder %s132, %s133
      %p144 = scmp.eq.s32.totalorder %s17, 0
      %p145 = por %p143, %p144
      %p146 = scmp.ne.s32.totalorder %s132, %s133
      %p147 = scmp.eq.s32.totalorder %s18, 1
      %p148 = por %p146, %p147
      %p150 = scmp.ne.s32.totalorder %s133, %s149
      %p151 = scmp.eq.s32.totalorder %s18, 0
      %p152 = por %p150, %p151
      %p153 = scmp.le.s32.totalorder 1, %s12
      %p154 = scmp.lt.s32.totalorder %s12, 3
      %p155 = pnand %p153, %p154
      %p156 = pneg %p155
      // Predicated region
      $region9: #{tpu_custom_call.1} parent=5 // pred_check
        _
      $region10: #{tpu_custom_call.1} parent=5 // pred_check_branch
        %158 = sbr.rel (%p155) target = $region12
      $region11: #{tpu_custom_call.1} parent=5 // pred_region
        %s159 = ssub.s32 %s12, 1
      $region12: #{tpu_custom_call.1} parent=5 // pred_fallthru
        _
      %p160 = scmp.lt.s32.totalorder %s12, 2
      // Predicated region
      $region13: #{tpu_custom_call.1} parent=5 // pred_check
        %p161 = pneg %p160
      $region14: #{tpu_custom_call.1} parent=5 // pred_check_branch
        %163 = sbr.rel (%p161) target = $region16
      $region15: #{tpu_custom_call.1} parent=5 // pred_region
        // Predicated region
        $region17: #{tpu_custom_call.1} parent=15 // pred_check
          %p164 = pneg %p55
        $region18: #{tpu_custom_call.1} parent=15 // pred_check_branch
          %166 = sbr.rel (%p164) target = $region20
        $region19: #{tpu_custom_call.1} parent=15 // pred_region
          %s167 = sand.u32 %s45, 1
          %s168 = scalar_lea.sflag [#allocation3], %s167
          %s169 = sand.u32 %s45, 1
          %s170 = smul.addr %s169, 8
          %s171 = scalar_lea.vmem [#allocation2], %s170
          %s172 = sadd.s32 %s20, %s21
          %s173 = smul.u32 2, %s172
          %175 = vsyncadd %s168, 0
          %s176 = smul.addr %s19, 2
          %s177 = sadd.s32 %s173, %s176
          %s178 = smul.addr %s177, 4
          %s179 = scalar_lea.hbm %s0, %s178
          %s181 = sshll.u32 %s179, 4
          %s182 = int_to_ptr.hbm [resolvable:$true] %s181
          %s183 = sshll.u32 %s171, 4
          %s184 = int_to_ptr.vmem [resolvable:$true] %s183
          %186 = dma.hbm_to_vmem [thread:$0]  %s182, 128, %s184, %s168
        $region20: #{tpu_custom_call.1} parent=15 // pred_fallthru
          _
        // Predicated region
        $region21: #{tpu_custom_call.1} parent=15 // pred_check
          %p187 = pneg %p85
        $region22: #{tpu_custom_call.1} parent=15 // pred_check_branch
          %189 = sbr.rel (%p187) target = $region24
        $region23: #{tpu_custom_call.1} parent=15 // pred_region
          %s190 = sadd.s32 %s20, %s21
          %s191 = smul.u32 2, %s190
          %p192 = scmp.lt.s32.totalorder %s19, 1
          %s193 = scalar_select %p192, %s19, 1
          %p194 = scmp.lt.s32.totalorder %s191, 1
          %s195 = scalar_select %p194, %s191, 1
          %s196 = smul.addr %s193, 2
          %s197 = sadd.s32 %s195, %s196
          %s198 = scalar_lea.vmem %s1, %s197
          %s199 = sadd.s32 %s20, %s21
          %s200 = smul.u32 2, %s199
        $region24: #{tpu_custom_call.1} parent=15 // pred_fallthru
          _
        // Predicated region
        $region25: #{tpu_custom_call.1} parent=15 // pred_check
          %p201 = pneg %p111
        $region26: #{tpu_custom_call.1} parent=15 // pred_check_branch
          %203 = sbr.rel (%p201) target = $region28
        $region27: #{tpu_custom_call.1} parent=15 // pred_region
          %p204 = scmp.lt.s32.totalorder %s19, 1
          %s205 = scalar_select %p204, %s19, 1
          %s206 = smul.addr %s205, 4
          %s207 = scalar_lea.vmem %s2, %s206
        $region28: #{tpu_custom_call.1} parent=15 // pred_fallthru
          _
      $region16: #{tpu_custom_call.1} parent=5 // pred_fallthru
        _
      %p208 = scmp.le.s32.totalorder 1, %s12
      %p209 = scmp.lt.s32.totalorder %s12, 3
      %p210 = pnand %p208, %p209
      %p211 = pneg %p210
      // Predicated region
      $region29: #{tpu_custom_call.1} parent=5 // pred_check
        _
      $region30: #{tpu_custom_call.1} parent=5 // pred_check_branch
        %213 = sbr.rel (%p210) target = $region32
      $region31: #{tpu_custom_call.1} parent=5 // pred_region
        %s214 = ssub.s32 %s12, 1
        %s215 = sand.u32 %s48, 1
        %s216 = scalar_lea.sflag [#allocation3], %s215
        %s217 = sand.u32 %s48, 1
        %s218 = smul.addr %s217, 8
        %s219 = scalar_lea.vmem [#allocation2], %s218
        // Predicated region
        $region33: #{tpu_custom_call.1} parent=31 // pred_check
          %p220 = pneg %p61
        $region34: #{tpu_custom_call.1} parent=31 // pred_check_branch
          %222 = sbr.rel (%p220) target = $region36
        $region35: #{tpu_custom_call.1} parent=31 // pred_region
          %224 = dma.done %s216, 128
        $region36: #{tpu_custom_call.1} parent=31 // pred_fallthru
          _
        %s225 = sand.u32 %s48, 1
        %s226 = scalar_lea.sflag [#allocation3], %s225
        %s227 = sand.u32 %s48, 1
        %s228 = smul.addr %s227, 8
        %s229 = scalar_lea.vmem [#allocation2], %s228
        %p230 = pneg %p61
        %p231 = pneg %p58
        %s232 = sadd.s32 %s23, %s24
        %s233 = smul.u32 2, %s232
        %p234 = scmp.lt.s32.totalorder %s22, 1
        %s235 = scalar_select %p234, %s22, 1
        %p236 = scmp.lt.s32.totalorder %s233, 1
        %s237 = scalar_select %p236, %s233, 1
        %s238 = smul.addr %s235, 2
        %s239 = sadd.s32 %s237, %s238
        %s240 = scalar_lea.vmem %s1, %s239
        %p241 = pneg %p91
        %p242 = pneg %p88
        %p243 = scmp.lt.s32.totalorder %s22, 1
        %s244 = scalar_select %p243, %s22, 1
        %s245 = smul.addr %s244, 4
        %s246 = scalar_lea.vmem %s2, %s245
        %p247 = pneg %p117
        %p248 = pneg %p114
        %p249 = pneg %p145
        %p250 = pneg %p142
        %p251 = scmp.lt.s32.totalorder %s22, 1
        %s252 = scalar_select %p251, %s22, 1
        %p253 = scmp.lt.s32.totalorder %s23, 0
        %s254 = scalar_select %p253, %s23, 0
        %s255 = smul.addr %s254, 2
        %s256 = smul.addr %s252, 2
        %s257 = sadd.s32 %s255, %s256
        %s258 = smul.addr %s257, 8
        %s259 = scalar_lea.vmem %s3, %s258
        %s260 = sadd.s32 %s23, %s24
        %s261 = smul.u32 2, %s260
        %s262 = sadd.s32 %s23, %s24
        %s263 = smul.u32 2, %s262
        %p264 = scmp.lt.s32.totalorder %s22, 1
        %s265 = scalar_select %p264, %s22, 1
        %p266 = scmp.lt.s32.totalorder %s263, 1
        %s267 = scalar_select %p266, %s263, 1
        %s268 = smul.addr %s265, 2
        %s269 = sadd.s32 %s267, %s268
        %s270 = scalar_lea.vmem %s1, %s269
        %s271 = sadd.s32 %s23, %s24
        %s272 = smul.u32 2, %s271
        %p273 = scmp.lt.s32.totalorder %s22, 1
        %s274 = scalar_select %p273, %s22, 1
        %s275 = smul.addr %s274, 4
        %s276 = scalar_lea.vmem %s2, %s275
        %p277 = scmp.lt.s32.totalorder %s22, 1
        %s278 = scalar_select %p277, %s22, 1
        %p279 = scmp.lt.s32.totalorder %s23, 0
        %s280 = scalar_select %p279, %s23, 0
        %s281 = smul.addr %s280, 2
        %s282 = smul.addr %s278, 2
        %s283 = sadd.s32 %s281, %s282
        %s284 = smul.addr %s283, 8
        %s285 = scalar_lea.vmem %s3, %s284
        %p286 = scmp.eq.s32.totalorder %s24, 0
        // Predicated region
        $region37: #{tpu_custom_call.1} parent=31 // pred_check
          %p287 = pneg %p286
        $region38: #{tpu_custom_call.1} parent=31 // pred_check_branch
          %289 = sbr.rel (%p287) target = $region40
        $region39: #{tpu_custom_call.1} parent=31 // pred_region
          %vm290 = vcmask 64512
          %291 = vst.msk [vmem:[%s285] sm:$0xff] %vm290, 0.0
          %292 = vst.msk [vmem:[%s285 + $0x8] sm:$0xff] %vm290, 0.0
        $region40: #{tpu_custom_call.1} parent=31 // pred_fallthru
          _
        %v293 = vld [vmem:[%s219] sm:$0xff]
        %v294 = vld [vmem:[%s270] sm:$0x3]
        %v295 = vld [vmem:[%s276] sm:$0xf]
        %297 = vset.pattern.permute.xlu0 0
        %298 = vperm.xlu0 %297, %v295
        %v299 = vpop.permute.xlu0 %298
        %v301 = vunpack.c.l.s4 839922192
        %v302 = vunpack.c.0.s8 %v301
        %v303 = vperm.slane %v299, %v302
        %v305 = vsub.f32 %v293, %v303
        %v306 = vmul.f32 %v305, %v305
        %308 = vst [vmem:[#allocation1] ss:$2 sm:$0xff] %v305
        %v309 = vld.sshfl [vmem:[#allocation1] sm:$0xff pattern:$0x75316420]
        %v310 = vld.sshfl [vmem:[#allocation1 + $0x8] sm:$0xff pattern:$0x75316420]
        %s314 = scalar_lea.vmem [#allocation1], 1
        %315 = vst [vmem:[%s314] ss:$2 sm:$0xff] %v306
        %v316 = vld.sshfl [vmem:[#allocation1] sm:$0xff pattern:$0x75316420]
        %v317 = vld.sshfl [vmem:[#allocation1 + $0x8] sm:$0xff pattern:$0x75316420]
        %vm320 = vcmask 1043456
        %v321 = vsel %vm320, %v309, %v316
        %v322 = vsel %vm320, %v310, %v317
        %vm323 = vcmask 1040384
        %v324 = vsel %vm323, 1.0, 0.0
        %v325 = vlaneseq
        %v326 = vshrl.u32 %v325, 7
        %v327 = vsub.s32 %v294, 1
        %v328 = vperm.slane %v327, 0
        %v329 = vperm.slane %v327, 1
        %vm330 = vcmp.eq.s32.totalorder %v326, %v328
        %vm331 = vcmp.eq.s32.totalorder %v326, %v329
        %v332 = vsel %vm330, 1, 0
        %v333 = vsel %vm331, 1, 0
        %v334 = vcvt.s32.f32 %v332
        %v335 = vcvt.s32.f32 %v333
        %336 = vmatpush.xpose.msra.mxu0 0.0
        %337 = vmatpush.xpose.msra.mxu0 0.0
        %338 = vmatpush.xpose.msra.mxu0 0.0
        %339 = vmatpush.xpose.msra.mxu0 0.0
        %340 = vmatpush.xpose.msra.mxu0 0.0
        %341 = vmatpush.xpose.msra.mxu0 0.0
        %342 = vmatpush.xpose.msra.mxu0 0.0
        %343 = vmatpush.xpose.msra.mxu0 0.0
        %344 = vmatpush.xpose.msra.mxu0 0.0
        %345 = vmatpush.xpose.msra.mxu0 0.0
        %346 = vmatpush.xpose.msra.mxu0 0.0
        %347 = vmatpush.xpose.msra.mxu0 0.0
        %348 = vmatpush.xpose.msra.mxu0 0.0
        %349 = vmatpush.xpose.msra.mxu0 0.0
        %350 = vmatpush.xpose.msra.mxu0 0.0
        %351 = vmatpush.xpose.msra.mxu0 %v334
        %352 = vmatmul.f32.gmra.mxu0 %v321
        %v353 = vpop.f32.mrf.mxu0
        %v354 = vadd.f32 0.0, %v353
        %355 = vmatmul.f32.gmra.mxu0 %v324
        %v356 = vpop.f32.mrf.mxu0
        %v357 = vadd.f32 0.0, %v356
        %358 = vdwg.mxu0
        %359 = vmatpush.xpose.msra.mxu0 0.0
        %360 = vmatpush.xpose.msra.mxu0 0.0
        %361 = vmatpush.xpose.msra.mxu0 0.0
        %362 = vmatpush.xpose.msra.mxu0 0.0
        %363 = vmatpush.xpose.msra.mxu0 0.0
        %364 = vmatpush.xpose.msra.mxu0 0.0
        %365 = vmatpush.xpose.msra.mxu0 0.0
        %366 = vmatpush.xpose.msra.mxu0 0.0
        %367 = vmatpush.xpose.msra.mxu0 0.0
        %368 = vmatpush.xpose.msra.mxu0 0.0
        %369 = vmatpush.xpose.msra.mxu0 0.0
        %370 = vmatpush.xpose.msra.mxu0 0.0
        %371 = vmatpush.xpose.msra.mxu0 0.0
        %372 = vmatpush.xpose.msra.mxu0 0.0
        %373 = vmatpush.xpose.msra.mxu0 0.0
        %374 = vmatpush.xpose.msra.mxu0 %v335
        %375 = vmatmul.f32.gmra.mxu0 %v322
        %v376 = vpop.f32.mrf.mxu0
        %v377 = vadd.f32 %v354, %v376
        %378 = vmatmul.f32.gmra.mxu0 %v324
        %v379 = vpop.f32.mrf.mxu0
        %v380 = vadd.f32 %v357, %v379
        %381 = vdwg.mxu0
        %v382 = vld [vmem:[%s285] sm:$0xff]
        %v383 = vld [vmem:[%s285 + $0x8] sm:$0xff]
        %v384 = vadd.f32 %v382, %v377
        %v385 = vadd.f32 %v383, %v380
        %vm386 = vcmask 64512
        %387 = vst.msk [vmem:[%s285] sm:$0xff] %vm386, %v384
        %388 = vst.msk [vmem:[%s285 + $0x8] sm:$0xff] %vm386, %v385
        %p389 = scmp.lt.s32.totalorder %s22, 1
        %s390 = scalar_select %p389, %s22, 1
        %p391 = scmp.lt.s32.totalorder %s23, 0
        %s392 = scalar_select %p391, %s23, 0
        %s393 = smul.addr %s392, 2
        %s394 = smul.addr %s390, 2
        %s395 = sadd.s32 %s393, %s394
        %s396 = smul.addr %s395, 8
        %s397 = scalar_lea.vmem %s3, %s396
        // Predicated region
        $region41: #{tpu_custom_call.1} parent=31 // pred_check
          %p398 = pneg %p142
        $region42: #{tpu_custom_call.1} parent=31 // pred_check_branch
          %400 = sbr.rel (%p398) target = $region44
        $region43: #{tpu_custom_call.1} parent=31 // pred_region
          _
        $region44: #{tpu_custom_call.1} parent=31 // pred_fallthru
          _
      $region32: #{tpu_custom_call.1} parent=5 // pred_fallthru
        _
      %p401 = scmp.le.s32.totalorder 2, %s12
      // Predicated region
      $region45: #{tpu_custom_call.1} parent=5 // pred_check
        %p402 = pneg %p401
      $region46: #{tpu_custom_call.1} parent=5 // pred_check_branch
        %404 = sbr.rel (%p402) target = $region48
      $region47: #{tpu_custom_call.1} parent=5 // pred_region
        %s405 = ssub.s32 %s12, 2
        // Predicated region
        $region49: #{tpu_custom_call.1} parent=47 // pred_check
          %p406 = pneg %p148
        $region50: #{tpu_custom_call.1} parent=47 // pred_check_branch
          %408 = sbr.rel (%p406) target = $region52
        $region51: #{tpu_custom_call.1} parent=47 // pred_region
          %p409 = scmp.lt.s32.totalorder %s25, 1
          %s410 = scalar_select %p409, %s25, 1
          %p411 = scmp.lt.s32.totalorder %s26, 0
          %s412 = scalar_select %p411, %s26, 0
          %s413 = smul.addr %s412, 2
          %s414 = smul.addr %s410, 2
          %s415 = sadd.s32 %s413, %s414
          %s416 = smul.addr %s415, 8
          %s417 = scalar_lea.vmem %s3, %s416
        $region52: #{tpu_custom_call.1} parent=47 // pred_fallthru
          _
      $region48: #{tpu_custom_call.1} parent=5 // pred_fallthru
        _
    $region6: #{tpu_custom_call.1} parent=1 // loop_footer
      %s16 = sadd.s32 1, %s12
    $region7: #{tpu_custom_call.1} parent=1 // loop_footer_branch
      %11 = sbr.rel target = $region3
    $region8: #{tpu_custom_call.1} parent=1 // loop_exit
      _
    %418 = vsyncpa [#allocation3], 1
    %s419 = scalar_lea.sflag [#allocation3], 1
    %420 = vsyncpa %s419, 1

</llo_original>
